<compile_context>
chip_gen: v6e
topology: v6e:2x2x1
jax: 0.10.0
libtpu: 0.0.40
codegen_flags: <defaults>
</compile_context>

<pallas_src>
import functools
import math

import jax
import jax.numpy as jnp
from jax.experimental import pallas as pl
from jax.experimental.pallas import tpu as pltpu

EPS = 1e-6
_MiB = 1024 * 1024


def _cdiv(a, b):
    return -(-a // b)


def _round_up(a, m):
    return _cdiv(a, m) * m


def _sublane_multiple(dtype):
    # Native sublane granularity: 8 rows for 4-byte, 16 for 2-byte, 32 for 1-byte.
    return max(8, 32 // max(jnp.dtype(dtype).itemsize, 1))


def _vmem_budget():
    """Returns (usable_budget_bytes, physical_capacity_bytes), generation-aware."""
    cap = 64 * _MiB  # conservative default (v7x per-TensorCore VMEM)
    try:
        cap = int(pltpu.get_tpu_info().vmem_capacity_bytes)
    except Exception:
        pass
    # Leave headroom for compiler-internal scratch: ~12 MiB on 64-MiB parts
    # (v7x), 16 MiB on 128-MiB parts (v5e/v6e).
    headroom = 12 * _MiB if cap <= 64 * _MiB else 16 * _MiB
    return max(cap - headroom, 16 * _MiB), cap


def _pick_row_tile(n_rows, per_row_bytes, avail_bytes, gran):
    """Largest row tile (multiple of `gran`, <= 1024) that fits the VMEM budget,
    keeping >= 2 grid steps so both v7x TensorCores get work."""
    if n_rows <= gran:
        return n_rows  # one full block (legal: equals the array dim)
    avail = max(avail_bytes, gran * per_row_bytes)
    cap = min(int(avail // max(per_row_bytes, 1)), 1024)
    cap = max(cap // gran * gran, gran)
    tile = min(cap, _round_up(_cdiv(n_rows, 2), gran))
    if n_rows % tile:
        # Prefer an exact divisor (no partial last tile) if it costs <= ~2x steps.
        t = tile
        while t >= max(tile // 2, gran):
            if n_rows % t == 0:
                return t
            t -= gran
    return tile


def _residual_kernel(*refs, dropout_p: float, ln_dim: int, n_col_tiles: int,
                     col_tile: int, use_tpu_prng: bool, has_bits: bool,
                     approx_recip: bool, fold: int):
    it = iter(refs)
    seed_ref = next(it) if use_tpu_prng else None
    alpha_ref = next(it)
    seg_ref = next(it) if fold > 1 else None
    x_ref = next(it)
    w_ref = next(it)
    b_ref = next(it)
    bits_ref = next(it) if has_bits else None
    o_ref = next(it)

    x = x_ref[...].astype(jnp.float32)            # (TM, D_view), full feature rows
    inv_d = 1.0 / ln_dim
    inv_dm1 = 1.0 / max(ln_dim - 1, 1)            # unbiased (ddof=1), D==1 guard

    # ---- LayerNorm statistics: two-pass (mean, then centered variance) to
    # avoid the single-pass catastrophic-cancellation issue. ----
    if fold > 1:
        # Rows were packed along the lane axis ([Nf, fold*ln_dim]); per-logical-row
        # sums become a matmul with a block-diagonal ones matrix (MXU, no reshape).
        seg = seg_ref[...]                        # (D_view, D_view) f32, 0/1 blocks
        mean = jnp.dot(x, seg, preferred_element_type=jnp.float32) * inv_d
        xc = x - mean
        var = jnp.dot(xc * xc, seg, preferred_element_type=jnp.float32) * inv_dm1
    else:
        mean = jnp.sum(x, axis=-1, keepdims=True) * inv_d
        xc = x - mean
        var = jnp.sum(xc * xc, axis=-1, keepdims=True) * inv_dm1

    denom = jnp.sqrt(var) + EPS                   # eps added to std, not var
    if approx_recip:
        inv = pl.reciprocal(denom, approx=True)   # EUP slot (training path only)
    else:
        inv = 1.0 / denom                         # exact on the deterministic path
    normed = xc * (alpha_ref[0] * inv)            # beta is folded into the bias

    # ---- sublayer: Linear — bf16 MXU operands, f32 accumulation ----
    y = jnp.dot(normed.astype(jnp.bfloat16), w_ref[...],
                preferred_element_type=jnp.float32)
    y = y + b_ref[...]                            # (1, TN) f32, includes beta*W.sum(0)

    # ---- dropout (inverted scaling), integer-threshold compare ----
    if dropout_p >= 1.0:
        y = jnp.zeros_like(y)
    elif dropout_p > 0.0:
        threshold = jnp.uint32(min(int(round(dropout_p * 4294967296.0)),
                                   4294967295))
        if use_tpu_prng:
            # Streams depend only on (seed, grid position) -> order-independent.
            flat_pid = pl.program_id(0) * pl.num_programs(1) + pl.program_id(1)
            pltpu.prng_seed(seed_ref[0], flat_pid)
            bits = pltpu.bitcast(pltpu.prng_random_bits(y.shape), jnp.uint32)
        else:
            bits = bits_ref[...]
        keep = bits >= threshold                  # drop with probability p
        y = jnp.where(keep, y * (1.0 / (1.0 - dropout_p)), 0.0)

    # ---- residual add ----
    if n_col_tiles == 1:
        x_res = x
    else:
        j = pl.program_id(1)
        start = pl.multiple_of(j * col_tile, 128)
        x_res = x_ref[:, pl.ds(start, col_tile)].astype(jnp.float32)
    o_ref[...] = (x_res + y).astype(o_ref.dtype)


def residual_connection(x, w, b, alpha, beta, seed, *, dropout_p=0.1,
                        tile_rows=None):
    """out = x + dropout(Linear(LayerNorm(x))).

    x: [B, S, D]; w: [D, D]; b: [D] or [1, D]; alpha/beta: scalar LN params;
    seed: int32 dropout seed.  Output dtype follows x (bf16 in -> bf16 out).
    """
    B, S, D = x.shape
    N = B * S
    io_dtype = x.dtype
    io_itemsize = jnp.dtype(io_dtype).itemsize

    # Fold beta into the Linear bias (exact):
    #   Linear(alpha*n0 + beta) = (alpha*n0) @ W + (b + beta * W.sum(axis=0))
    w_f32 = jnp.asarray(w, jnp.float32)
    beta_f32 = jnp.asarray(beta, jnp.float32).reshape(-1)[0]
    b_eff = jnp.asarray(b, jnp.float32).reshape(-1) + beta_f32 * jnp.sum(w_f32, axis=0)
    alpha_f32 = jnp.asarray(alpha, jnp.float32).reshape(-1)[:1]

    # Tiny-D lane packing: fold rows into the lane axis so loads/stores are
    # lane-dense; Linear becomes block-diagonal, LN stats a segment matmul.
    fold = 1
    if 1 < D < 128 and 128 % D == 0 and N % (128 // D) == 0:
        fold = 128 // D
    d_view = D * fold
    n_view = N // fold

    x_view = x.reshape(n_view, d_view)            # free (row-major) reinterpretation
    if fold > 1:
        w_view = jnp.kron(jnp.eye(fold, dtype=jnp.float32), w_f32).astype(jnp.bfloat16)
        b_view = jnp.tile(b_eff, fold).reshape(1, d_view)
        seg_arr = jnp.kron(jnp.eye(fold, dtype=jnp.float32),
                           jnp.ones((D, D), jnp.float32))
    else:
        w_view = w_f32.astype(jnp.bfloat16)       # resident bf16 weight for the MXU
        b_view = b_eff.reshape(1, d_view)
        seg_arr = None

    on_tpu = jax.default_backend() == "tpu"
    do_dropout = 0.0 < dropout_p < 1.0
    use_tpu_prng = on_tpu and do_dropout          # in-kernel hardware PRNG
    has_bits = do_dropout and not on_tpu          # portability fallback (interpret)

    budget, phys_cap = _vmem_budget()
    gran = _sublane_multiple(io_dtype)

    # VMEM accounting: BlockSpec buffers *and* in-kernel full-tile f32 temporaries
    # (x upcast, centered x, normed, matmul result, dropout bits/mask, ...).
    n_f32_temps = 6 + (3 if has_bits else 0)
    per_row_res = 4 * d_view * io_itemsize + n_f32_temps * d_view * 4
    fixed_res = d_view * d_view * 2 + 2 * d_view * 4 + 2 * _MiB  # W (1 buf) + bias + slack
    if fold > 1:
        fixed_res += d_view * d_view * 4          # resident segment matrix

    # Column tiling of W for large D (earlier on 64-MiB-VMEM parts, i.e. v7x).
    use_col = (fold == 1 and D % 128 == 0 and
               ((D >= 2048 and phys_cap <= 64 * _MiB) or
                fixed_res + 128 * per_row_res > budget))

    if use_col:
        tn = next(t for t in (1024, 512, 256, 128) if D % t == 0)
        n_col = D // tn
        per_row = (2 * d_view * io_itemsize + 2 * tn * io_itemsize
                   + 3 * d_view * 4 + (3 + (3 if has_bits else 0)) * tn * 4)
        fixed = 2 * D * tn * 2 + 2 * tn * 4 + 2 * _MiB   # W column blocks, double-buffered
    else:
        tn = d_view
        n_col = 1
        per_row = per_row_res
        fixed = fixed_res

    if tile_rows is None:
        tile_rows = _pick_row_tile(n_view, per_row, budget - fixed, gran)
    tile_rows = max(1, min(int(tile_rows), n_view))
    n_row = _cdiv(n_view, tile_rows)              # partial last tile handled by Pallas

    row_spec = pl.BlockSpec((tile_rows, d_view), lambda i, j: (i, 0))
    out_spec = pl.BlockSpec((tile_rows, tn), lambda i, j: (i, j))
    smem_spec = pl.BlockSpec(memory_space=pltpu.SMEM)
    if use_col:
        w_block, w_map = (d_view, tn), (lambda i, j: (0, j))
        b_block, b_map = (1, tn), (lambda i, j: (0, j))
    else:
        w_block, w_map = (d_view, d_view), (lambda i, j: (0, 0))
        b_block, b_map = (1, d_view), (lambda i, j: (0, 0))

    kernel = functools.partial(
        _residual_kernel, dropout_p=float(dropout_p), ln_dim=D,
        n_col_tiles=n_col, col_tile=tn, use_tpu_prng=use_tpu_prng,
        has_bits=has_bits, approx_recip=(on_tpu and do_dropout), fold=fold)

    def build(single_buffer_weights):
        if single_buffer_weights and not use_col:
            # Constant index_map => the block never changes; double-buffering it
            # only burns VMEM (W is the biggest resident object).
            w_spec = pl.BlockSpec(w_block, w_map, pipeline_mode=pl.Buffered(1))
            b_spec = pl.BlockSpec(b_block, b_map, pipeline_mode=pl.Buffered(1))
            seg_spec = pl.BlockSpec((d_view, d_view), lambda i, j: (0, 0),
                                    pipeline_mode=pl.Buffered(1))
        else:
            w_spec = pl.BlockSpec(w_block, w_map)
            b_spec = pl.BlockSpec(b_block, b_map)
            seg_spec = pl.BlockSpec((d_view, d_view), lambda i, j: (0, 0))

        in_specs, inputs = [], []
        if use_tpu_prng:
            in_specs.append(smem_spec)
            inputs.append(jnp.asarray(seed, jnp.int32).reshape(-1)[:1])
        in_specs.append(smem_spec)
        inputs.append(alpha_f32)
        if fold > 1:
            in_specs.append(seg_spec)
            inputs.append(seg_arr)
        in_specs += [row_spec, w_spec, b_spec]
        inputs += [x_view, w_view, b_view]
        if has_bits:
            seed0 = jnp.asarray(seed, jnp.int32).reshape(-1)[0]
            key = jax.random.fold_in(jax.random.PRNGKey(0), seed0)
            bits = jax.random.bits(key, (n_view, d_view), dtype=jnp.uint32)
            in_specs.append(pl.BlockSpec((tile_rows, tn), lambda i, j: (i, j)))
            inputs.append(bits)

        fn = pl.pallas_call(
            kernel,
            out_shape=jax.ShapeDtypeStruct((n_view, d_view), io_dtype),
            grid_spec=pl.GridSpec(
                grid=(n_row, n_col),
                in_specs=in_specs,
                out_specs=out_spec,
            ),
            compiler_params=pltpu.CompilerParams(
                # Every (row, col) grid point writes an independent output block
                # and PRNG streams depend only on (seed, grid position), so both
                # axes are order-independent -> shardable across v7x's two TCs.
                dimension_semantics=("parallel", "parallel"),
                vmem_limit_bytes=int(budget),
            ),
        )
        return fn, inputs

    out2 = None
    for single in (True, False):
        try:
            fn, inputs = build(single)
            out2 = fn(*inputs)
            break
        except Exception:
            if not single:
                raise
            # Fall back if this JAX build rejects single-buffered BlockSpecs.
    return out2.reshape(B, S, D)


if __name__ == "__main__":
    def reference(x, w, b, alpha, beta):
        d = x.shape[-1]
        xf = x.astype(jnp.float32)
        mean = jnp.mean(xf, axis=-1, keepdims=True)
        var = jnp.sum((xf - mean) ** 2, axis=-1, keepdims=True) / (d - 1)
        normed = alpha * (xf - mean) / (jnp.sqrt(var) + EPS) + beta
        return xf + (normed @ w + jnp.reshape(b, (1, -1)))

    key = jax.random.PRNGKey(0)
    k1, k2, k3, k4, k5 = jax.random.split(key, 5)

    alpha = jnp.full((1,), 1.3, dtype=jnp.float32)   # LayerNormalization.alpha
    beta = jnp.full((1,), -0.2, dtype=jnp.float32)   # LayerNormalization.bias
    seed = jnp.array([1234], dtype=jnp.int32)        # dropout RNG seed

    # --- Config 1: d_model=32 (small-D lane-packing path), f32 I/O. ---
    B, S, D = 2, 16, 32
    x = jax.random.normal(k1, (B, S, D), dtype=jnp.float32)
    w = jax.random.normal(k2, (D, D), dtype=jnp.float32) / math.sqrt(D)
    b = jax.random.normal(k3, (D,), dtype=jnp.float32) * 0.1

    out_eval = residual_connection(x, w, b, alpha, beta, seed, dropout_p=0.0)
    jax.block_until_ready(out_eval)
    ref = reference(x, w, b, alpha, beta)
    err = float(jnp.max(jnp.abs(out_eval - ref)))
    assert out_eval.shape == (B, S, D) and out_eval.dtype == x.dtype
    assert err < 0.15, f"mismatch vs reference (D=32): {err}"

    out_train = residual_connection(x, w, b, alpha, beta, seed, dropout_p=0.1)
    jax.block_until_ready(out_train)
    assert out_train.shape == (B, S, D)
    assert bool(jnp.all(jnp.isfinite(out_train)))

    # --- Config 2: d_model=128 (lane-dense generic path), bf16 I/O. ---
    B2, S2, D2 = 2, 16, 128
    x2 = jax.random.normal(k4, (B2, S2, D2), dtype=jnp.float32).astype(jnp.bfloat16)
    w2 = jax.random.normal(k5, (D2, D2), dtype=jnp.float32) / math.sqrt(D2)
    b2 = jnp.zeros((D2,), dtype=jnp.float32)

    out2 = residual_connection(x2, w2, b2, alpha, beta, seed, dropout_p=0.0)
    jax.block_until_ready(out2)
    ref2 = reference(x2, w2, b2, alpha, beta)
    err2 = float(jnp.max(jnp.abs(out2.astype(jnp.float32) - ref2)))
    assert out2.shape == (B2, S2, D2) and out2.dtype == x2.dtype
    assert err2 < 0.25, f"mismatch vs reference (D=128): {err2}"

    print("KERNEL_OK")
</pallas_src>

<mosaic_0001>
module attributes {stable_mosaic.version = 11 : i64} {
  func.func @_residual_kernel(%arg0: i32, %arg1: i32, %arg2: memref<1xf32, #tpu.memory_space<smem>>, %arg3: memref<128x128xf32, #tpu.memory_space<vmem>>, %arg4: memref<8x128xf32, #tpu.memory_space<vmem>>, %arg5: memref<128x128xbf16, #tpu.memory_space<vmem>>, %arg6: memref<1x128xf32, #tpu.memory_space<vmem>>, %arg7: memref<8x128xf32, #tpu.memory_space<vmem>>) attributes {dimension_semantics = [#tpu.dimension_semantics<parallel>, #tpu.dimension_semantics<parallel>], iteration_bounds = array<i64: 1, 1>, scalar_prefetch = 0 : i64, scratch_operands = 0 : i64, tpu.core_type = #tpu.core_type<tc>, window_params = [{transform_indices = @transform_0, window_bounds = array<i64: 1>}, {pipeline_mode = #tpu.pipeline_mode<synchronous>, transform_indices = @transform_1, window_bounds = array<i64: 128, 128>}, {transform_indices = @transform_2, window_bounds = array<i64: 8, 128>}, {pipeline_mode = #tpu.pipeline_mode<synchronous>, transform_indices = @transform_3, window_bounds = array<i64: 128, 128>}, {pipeline_mode = #tpu.pipeline_mode<synchronous>, transform_indices = @transform_4, window_bounds = array<i64: 1, 128>}, {transform_indices = @transform_5, window_bounds = array<i64: 8, 128>}]} {
    %c0 = arith.constant 0 : index
    %c0_0 = arith.constant 0 : index
    %0 = vector.load %arg4[%c0, %c0_0] : memref<8x128xf32, #tpu.memory_space<vmem>>, vector<8x128xf32>
    %c0_1 = arith.constant 0 : index
    %c0_2 = arith.constant 0 : index
    %1 = vector.load %arg3[%c0_1, %c0_2] : memref<128x128xf32, #tpu.memory_space<vmem>>, vector<128x128xf32>
    %cst = arith.constant dense<0.000000e+00> : vector<8x128xf32>
    %2 = tpu.matmul %0, %1, %cst {dimension_numbers = #tpu.dot_dimension_numbers<[1], [0], [0], [1], [0, 0, 1, 1], [], []>} : vector<8x128xf32>, vector<128x128xf32>, vector<8x128xf32> -> vector<8x128xf32>
    %cst_3 = arith.constant 3.125000e-02 : f32
    %3 = vector.broadcast %cst_3 : f32 to vector<8x128xf32>
    %4 = arith.mulf %2, %3 : vector<8x128xf32>
    %5 = arith.subf %0, %4 : vector<8x128xf32>
    %6 = arith.mulf %5, %5 : vector<8x128xf32>
    %cst_4 = arith.constant dense<0.000000e+00> : vector<8x128xf32>
    %7 = tpu.matmul %6, %1, %cst_4 {dimension_numbers = #tpu.dot_dimension_numbers<[1], [0], [0], [1], [0, 0, 1, 1], [], []>} : vector<8x128xf32>, vector<128x128xf32>, vector<8x128xf32> -> vector<8x128xf32>
    %cst_5 = arith.constant 0.0322580636 : f32
    %8 = vector.broadcast %cst_5 : f32 to vector<8x128xf32>
    %9 = arith.mulf %7, %8 : vector<8x128xf32>
    %10 = math.sqrt %9 : vector<8x128xf32>
    %cst_6 = arith.constant 9.99999997E-7 : f32
    %11 = vector.broadcast %cst_6 : f32 to vector<8x128xf32>
    %12 = arith.addf %10, %11 : vector<8x128xf32>
    %cst_7 = arith.constant 1.000000e+00 : f32
    %13 = vector.broadcast %cst_7 : f32 to vector<8x128xf32>
    %14 = arith.divf %13, %12 : vector<8x128xf32>
    %c0_8 = arith.constant 0 : index
    %15 = memref.load %arg2[%c0_8] : memref<1xf32, #tpu.memory_space<smem>>
    %16 = vector.broadcast %15 : f32 to vector<8x128xf32>
    %17 = arith.mulf %16, %14 : vector<8x128xf32>
    %18 = arith.mulf %5, %17 : vector<8x128xf32>
    %19 = arith.truncf %18 : vector<8x128xf32> to vector<8x128xbf16>
    %c0_9 = arith.constant 0 : index
    %c0_10 = arith.constant 0 : index
    %20 = vector.load %arg5[%c0_9, %c0_10] : memref<128x128xbf16, #tpu.memory_space<vmem>>, vector<128x128xbf16>
    %cst_11 = arith.constant dense<0.000000e+00> : vector<8x128xf32>
    %21 = tpu.matmul %19, %20, %cst_11 {dimension_numbers = #tpu.dot_dimension_numbers<[1], [0], [0], [1], [0, 0, 1, 1], [], []>} : vector<8x128xbf16>, vector<128x128xbf16>, vector<8x128xf32> -> vector<8x128xf32>
    %c0_12 = arith.constant 0 : index
    %c0_13 = arith.constant 0 : index
    %22 = vector.load %arg6[%c0_12, %c0_13] : memref<1x128xf32, #tpu.memory_space<vmem>>, vector<1x128xf32>
    %23 = vector.broadcast %22 : vector<1x128xf32> to vector<8x128xf32>
    %24 = arith.addf %21, %23 : vector<8x128xf32>
    %25 = arith.addf %0, %24 : vector<8x128xf32>
    %c0_14 = arith.constant 0 : index
    %c0_15 = arith.constant 0 : index
    %26 = vector.load %arg7[%c0_14, %c0_15] : memref<8x128xf32, #tpu.memory_space<vmem>>, vector<8x128xf32>
    tpu.vector_store %arg7[%c0_14, %c0_15], %25 {strides = array<i32>} : memref<8x128xf32, #tpu.memory_space<vmem>>, vector<8x128xf32>,
    return
  }
  func.func @transform_0(%arg0: i32, %arg1: i32) -> i32 {
    %c0_i32 = arith.constant 0 : i32
    %c0_i32_0 = arith.constant 0 : i32
    return %c0_i32 : i32
  }
  func.func @transform_1(%arg0: i32, %arg1: i32) -> (i32, i32) {
    %c0_i32 = arith.constant 0 : i32
    %c0_i32_0 = arith.constant 0 : i32
    %c0_i32_1 = arith.constant 0 : i32
    return %c0_i32, %c0_i32_0 : i32, i32
  }
  func.func @transform_2(%arg0: i32, %arg1: i32) -> (i32, i32) {
    %c0_i32 = arith.constant 0 : i32
    %c0_i32_0 = arith.constant 0 : i32
    return %arg0, %c0_i32 : i32, i32
  }
  func.func @transform_3(%arg0: i32, %arg1: i32) -> (i32, i32) {
    %c0_i32 = arith.constant 0 : i32
    %c0_i32_0 = arith.constant 0 : i32
    %c0_i32_1 = arith.constant 0 : i32
    return %c0_i32, %c0_i32_0 : i32, i32
  }
  func.func @transform_4(%arg0: i32, %arg1: i32) -> (i32, i32) {
    %c0_i32 = arith.constant 0 : i32
    %c0_i32_0 = arith.constant 0 : i32
    %c0_i32_1 = arith.constant 0 : i32
    return %c0_i32, %c0_i32_0 : i32, i32
  }
  func.func @transform_5(%arg0: i32, %arg1: i32) -> (i32, i32) {
    %c0_i32 = arith.constant 0 : i32
    return %arg0, %arg1 : i32, i32
  }
}

module attributes {stable_mosaic.version = 11 : i64} {
  func.func @_residual_kernel(%arg0: i32, %arg1: i32, %arg2: memref<1xf32, #tpu.memory_space<smem>>, %arg3: memref<128x128xf32, #tpu.memory_space<vmem>>, %arg4: memref<8x128xf32, #tpu.memory_space<vmem>>, %arg5: memref<128x128xbf16, #tpu.memory_space<vmem>>, %arg6: memref<1x128xf32, #tpu.memory_space<vmem>>, %arg7: memref<8x128xf32, #tpu.memory_space<vmem>>) attributes {dimension_semantics = [#tpu.dimension_semantics<parallel>, #tpu.dimension_semantics<parallel>], iteration_bounds = array<i64: 1, 1>, scalar_prefetch = 0 : i64, scratch_operands = 0 : i64, tpu.core_type = #tpu.core_type<tc>, window_params = [{transform_indices = @transform_0, window_bounds = array<i64: 1>}, {pipeline_mode = #tpu.pipeline_mode<synchronous>, transform_indices = @transform_1, window_bounds = array<i64: 128, 128>}, {transform_indices = @transform_2, window_bounds = array<i64: 8, 128>}, {pipeline_mode = #tpu.pipeline_mode<synchronous>, transform_indices = @transform_3, window_bounds = array<i64: 128, 128>}, {pipeline_mode = #tpu.pipeline_mode<synchronous>, transform_indices = @transform_4, window_bounds = array<i64: 1, 128>}, {transform_indices = @transform_5, window_bounds = array<i64: 8, 128>}]} {
    %c0 = arith.constant 0 : index
    %c0_0 = arith.constant 0 : index
    %0 = vector.load %arg4[%c0, %c0_0] : memref<8x128xf32, #tpu.memory_space<vmem>>, vector<8x128xf32>
    %c0_1 = arith.constant 0 : index
    %c0_2 = arith.constant 0 : index
    %1 = vector.load %arg3[%c0_1, %c0_2] : memref<128x128xf32, #tpu.memory_space<vmem>>, vector<128x128xf32>
    %cst = arith.constant dense<0.000000e+00> : vector<8x128xf32>
    %2 = tpu.matmul %0, %1, %cst {dimension_numbers = #tpu.dot_dimension_numbers<[1], [0], [0], [1], [0, 0, 1, 1], [], []>} : vector<8x128xf32>, vector<128x128xf32>, vector<8x128xf32> -> vector<8x128xf32>
    %cst_3 = arith.constant 3.125000e-02 : f32
    %3 = vector.broadcast %cst_3 : f32 to vector<8x128xf32>
    %4 = arith.mulf %2, %3 : vector<8x128xf32>
    %5 = arith.subf %0, %4 : vector<8x128xf32>
    %6 = arith.mulf %5, %5 : vector<8x128xf32>
    %cst_4 = arith.constant dense<0.000000e+00> : vector<8x128xf32>
    %7 = tpu.matmul %6, %1, %cst_4 {dimension_numbers = #tpu.dot_dimension_numbers<[1], [0], [0], [1], [0, 0, 1, 1], [], []>} : vector<8x128xf32>, vector<128x128xf32>, vector<8x128xf32> -> vector<8x128xf32>
    %cst_5 = arith.constant 0.0322580636 : f32
    %8 = vector.broadcast %cst_5 : f32 to vector<8x128xf32>
    %9 = arith.mulf %7, %8 : vector<8x128xf32>
    %10 = math.sqrt %9 : vector<8x128xf32>
    %cst_6 = arith.constant 9.99999997E-7 : f32
    %11 = vector.broadcast %cst_6 : f32 to vector<8x128xf32>
    %12 = arith.addf %10, %11 : vector<8x128xf32>
    %cst_7 = arith.constant 1.000000e+00 : f32
    %13 = vector.broadcast %cst_7 : f32 to vector<8x128xf32>
    %14 = arith.divf %13, %12 : vector<8x128xf32>
    %c0_8 = arith.constant 0 : index
    %15 = memref.load %arg2[%c0_8] : memref<1xf32, #tpu.memory_space<smem>>
    %16 = vector.broadcast %15 : f32 to vector<8x128xf32>
    %17 = arith.mulf %16, %14 : vector<8x128xf32>
    %18 = arith.mulf %5, %17 : vector<8x128xf32>
    %19 = arith.truncf %18 : vector<8x128xf32> to vector<8x128xbf16>
    %c0_9 = arith.constant 0 : index
    %c0_10 = arith.constant 0 : index
    %20 = vector.load %arg5[%c0_9, %c0_10] : memref<128x128xbf16, #tpu.memory_space<vmem>>, vector<128x128xbf16>
    %cst_11 = arith.constant dense<0.000000e+00> : vector<8x128xf32>
    %21 = tpu.matmul %19, %20, %cst_11 {dimension_numbers = #tpu.dot_dimension_numbers<[1], [0], [0], [1], [0, 0, 1, 1], [], []>} : vector<8x128xbf16>, vector<128x128xbf16>, vector<8x128xf32> -> vector<8x128xf32>
    %c0_12 = arith.constant 0 : index
    %c0_13 = arith.constant 0 : index
    %22 = vector.load %arg6[%c0_12, %c0_13] : memref<1x128xf32, #tpu.memory_space<vmem>>, vector<1x128xf32>
    %23 = vector.broadcast %22 : vector<1x128xf32> to vector<8x128xf32>
    %24 = arith.addf %21, %23 : vector<8x128xf32>
    %25 = arith.addf %0, %24 : vector<8x128xf32>
    %c0_14 = arith.constant 0 : index
    %c0_15 = arith.constant 0 : index
    %26 = vector.load %arg7[%c0_14, %c0_15] : memref<8x128xf32, #tpu.memory_space<vmem>>, vector<8x128xf32>
    tpu.vector_store %arg7[%c0_14, %c0_15], %25 {strides = array<i32>} : memref<8x128xf32, #tpu.memory_space<vmem>>, vector<8x128xf32>,
    return
  }
  func.func @transform_0(%arg0: i32, %arg1: i32) -> i32 {
    %c0_i32 = arith.constant 0 : i32
    %c0_i32_0 = arith.constant 0 : i32
    return %c0_i32 : i32
  }
  func.func @transform_1(%arg0: i32, %arg1: i32) -> (i32, i32) {
    %c0_i32 = arith.constant 0 : i32
    %c0_i32_0 = arith.constant 0 : i32
    %c0_i32_1 = arith.constant 0 : i32
    return %c0_i32, %c0_i32_0 : i32, i32
  }
  func.func @transform_2(%arg0: i32, %arg1: i32) -> (i32, i32) {
    %c0_i32 = arith.constant 0 : i32
    %c0_i32_0 = arith.constant 0 : i32
    return %arg0, %c0_i32 : i32, i32
  }
  func.func @transform_3(%arg0: i32, %arg1: i32) -> (i32, i32) {
    %c0_i32 = arith.constant 0 : i32
    %c0_i32_0 = arith.constant 0 : i32
    %c0_i32_1 = arith.constant 0 : i32
    return %c0_i32, %c0_i32_0 : i32, i32
  }
  func.func @transform_4(%arg0: i32, %arg1: i32) -> (i32, i32) {
    %c0_i32 = arith.constant 0 : i32
    %c0_i32_0 = arith.constant 0 : i32
    %c0_i32_1 = arith.constant 0 : i32
    return %c0_i32, %c0_i32_0 : i32, i32
  }
  func.func @transform_5(%arg0: i32, %arg1: i32) -> (i32, i32) {
    %c0_i32 = arith.constant 0 : i32
    return %arg0, %arg1 : i32, i32
  }
}

</mosaic_0001>

<llo_original>
// kernel: tpu_custom_call.1
$region0: #{tpu_custom_call.1}
  #allocation0 [shape = 'u32[]', space=smem, size = 0x4, offset = 0x4, fixed_abs, tag = 'smem constant byte address 0x4 - core index']
  #allocation1 [shape = 'u32[144,128]{1,0:T(1,128)}', space=vmem, size = 0x12000, scoped, tag = 'internal scratch']
  #allocation2 [shape = 'f32[1]{0:T(128)S(6)}', space=smem, size = 0x200, scoped, tag = 'scoped memory for tpu_custom_call.1']
  %s0 = inlined_call_operand.<no memory space> [shape: f32[1], index: 0, kind: input, shape index: {}]
  %s1 = inlined_call_operand.hbm [shape: f32[128,128], index: 1, kind: input, shape index: {}]
  %s2 = inlined_call_operand.hbm [shape: f32[8,128], index: 2, kind: input, shape index: {}]
  %s3 = inlined_call_operand.hbm [shape: bf16[128,128], index: 3, kind: input, shape index: {}]
  %s4 = inlined_call_operand.vmem [shape: f32[1,128], index: 4, kind: input, shape index: {}]
  %s5 = inlined_call_operand.hbm [shape: f32[8,128], index: 5, kind: output, shape index: {}]
  %s6 = sld [smem:[#allocation0]]
  $region42: #{tpu_custom_call.1} parent=0
    _
  %s8 = ssub.s32 1, %s6
  %s9 = scalar_select 0, %s8, %s6
  %10 = sst [smem:[#allocation2]] %s0
  $region1: #{tpu_custom_call.1} parent=0
    #allocation3 [shape = 'u8[65536]{0}', space=vmem, size = 0x10000, scoped, tag = 'input window, operand 1, single buffered']
    #allocation4 [shape = 's32[1]{0}', space=sflag, size = 0x4, scoped, tag = 'scoped memory for tpu_custom_call.1']
    #allocation5 [shape = 's32[1]{0}', space=sflag, size = 0x4, scoped, tag = 'scoped memory for tpu_custom_call.1']
    #allocation6 [shape = 'u8[4096]{0}', space=vmem, size = 0x1000, scoped, tag = 'input window, operand 2, single buffered']
    #allocation7 [shape = 's32[1]{0}', space=sflag, size = 0x4, scoped, tag = 'scoped memory for tpu_custom_call.1']
    #allocation8 [shape = 'u8[32768]{0}', space=vmem, size = 0x8000, scoped, tag = 'input window, operand 3, single buffered']
    #allocation9 [shape = 'u8[4096]{0}', space=vmem, size = 0x1000, scoped, tag = 'output window, operand 0, single buffered']
    %11 = vsyncpa [#allocation4], 0
    %12 = vsyncpa [#allocation7], 0
    %13 = vsyncpa [#allocation5], 0
    // Predicated region
    $region2: #{tpu_custom_call.1} parent=1 // pred_check
      _
    $region3: #{tpu_custom_call.1} parent=1 // pred_check_branch
      %15 = sbr.rel (0) target = $region5
    $region4: #{tpu_custom_call.1} parent=1 // pred_region
      _
    $region5: #{tpu_custom_call.1} parent=1 // pred_fallthru
      _
    // Predicated region
    $region6: #{tpu_custom_call.1} parent=1 // pred_check
      _
    $region7: #{tpu_custom_call.1} parent=1 // pred_check_branch
      %17 = sbr.rel (0) target = $region9
    $region8: #{tpu_custom_call.1} parent=1 // pred_region
      %s19 = ssub.s32 2048, 2048
      %20 = vsyncadd [#allocation4], %s19
      %s21 = sshll.u32 [#allocation3], 4
      %s22 = int_to_ptr.vmem [resolvable:$true] %s21
      %27 = dma.hbm_to_vmem [thread:$0]  %s1, 2048, %s22, [#allocation4], 128, 128, 8
    $region9: #{tpu_custom_call.1} parent=1 // pred_fallthru
      _
    // Predicated region
    $region10: #{tpu_custom_call.1} parent=1 // pred_check
      _
    $region11: #{tpu_custom_call.1} parent=1 // pred_check_branch
      %29 = sbr.rel (0) target = $region13
    $region12: #{tpu_custom_call.1} parent=1 // pred_region
      %s31 = ssub.s32 128, 128
      %32 = vsyncadd [#allocation7], %s31
      %s34 = sshll.u32 [#allocation6], 4
      %s35 = int_to_ptr.vmem [resolvable:$true] %s34
      %37 = dma.hbm_to_vmem [thread:$0]  %s2, 128, %s35, [#allocation7]
    $region13: #{tpu_custom_call.1} parent=1 // pred_fallthru
      _
    // Predicated region
    $region14: #{tpu_custom_call.1} parent=1 // pred_check
      _
    $region15: #{tpu_custom_call.1} parent=1 // pred_check_branch
      %39 = sbr.rel (0) target = $region17
    $region16: #{tpu_custom_call.1} parent=1 // pred_region
      %s41 = ssub.s32 1024, 1024
      %42 = vsyncadd [#allocation7], %s41
      %s43 = sshll.u32 [#allocation8], 4
      %s44 = int_to_ptr.vmem [resolvable:$true] %s43
      %49 = dma.hbm_to_vmem [thread:$0]  %s3, 1024, %s44, [#allocation7], 64, 64, 4
    $region17: #{tpu_custom_call.1} parent=1 // pred_fallthru
      _
    // Predicated region
    $region18: #{tpu_custom_call.1} parent=1 // pred_check
      _
    $region19: #{tpu_custom_call.1} parent=1 // pred_check_branch
      %51 = sbr.rel (0) target = $region21
    $region20: #{tpu_custom_call.1} parent=1 // pred_region
      _
    $region21: #{tpu_custom_call.1} parent=1 // pred_fallthru
      _
    // Predicated region
    $region22: #{tpu_custom_call.1} parent=1 // pred_check
      _
    $region23: #{tpu_custom_call.1} parent=1 // pred_check_branch
      %53 = sbr.rel (0) target = $region25
    $region24: #{tpu_custom_call.1} parent=1 // pred_region
      %54 = dma.done [#allocation4], 2048
    $region25: #{tpu_custom_call.1} parent=1 // pred_fallthru
      _
    // Predicated region
    $region26: #{tpu_custom_call.1} parent=1 // pred_check
      _
    $region27: #{tpu_custom_call.1} parent=1 // pred_check_branch
      %56 = sbr.rel (0) target = $region29
    $region28: #{tpu_custom_call.1} parent=1 // pred_region
      %57 = dma.done [#allocation7], 128
    $region29: #{tpu_custom_call.1} parent=1 // pred_fallthru
      _
    // Predicated region
    $region30: #{tpu_custom_call.1} parent=1 // pred_check
      _
    $region31: #{tpu_custom_call.1} parent=1 // pred_check_branch
      %59 = sbr.rel (0) target = $region33
    $region32: #{tpu_custom_call.1} parent=1 // pred_region
      %60 = dma.done [#allocation7], 1024
    $region33: #{tpu_custom_call.1} parent=1 // pred_fallthru
      _
    %v62 = vld [vmem:[#allocation6] sm:$0xff]
    %v63 = vld [vmem:[#allocation3] sm:$0xff]
    %v64 = vld [vmem:[#allocation3 + $0x8] sm:$0xff]
    %v65 = vld [vmem:[#allocation3 + $0x10] sm:$0xff]
    %v66 = vld [vmem:[#allocation3 + $0x18] sm:$0xff]
    %v67 = vld [vmem:[#allocation3 + $0x20] sm:$0xff]
    %v68 = vld [vmem:[#allocation3 + $0x28] sm:$0xff]
    %v69 = vld [vmem:[#allocation3 + $0x30] sm:$0xff]
    %v70 = vld [vmem:[#allocation3 + $0x38] sm:$0xff]
    %v71 = vld [vmem:[#allocation3 + $0x40] sm:$0xff]
    %v72 = vld [vmem:[#allocation3 + $0x48] sm:$0xff]
    %v73 = vld [vmem:[#allocation3 + $0x50] sm:$0xff]
    %v74 = vld [vmem:[#allocation3 + $0x58] sm:$0xff]
    %v75 = vld [vmem:[#allocation3 + $0x60] sm:$0xff]
    %v76 = vld [vmem:[#allocation3 + $0x68] sm:$0xff]
    %v77 = vld [vmem:[#allocation3 + $0x70] sm:$0xff]
    %v78 = vld [vmem:[#allocation3 + $0x78] sm:$0xff]
    %79 = vmatprep.subr.mxu0 0.0
    %80 = vmatpush1.msra.mxu0 %v78
    %81 = vmatprep.subr.mxu0 0.0
    %82 = vmatpush1.msra.mxu0 %v77
    %83 = vmatprep.subr.mxu0 0.0
    %84 = vmatpush1.msra.mxu0 %v76
    %85 = vmatprep.subr.mxu0 0.0
    %86 = vmatpush1.msra.mxu0 %v75
    %87 = vmatprep.subr.mxu0 0.0
    %88 = vmatpush1.msra.mxu0 %v74
    %89 = vmatprep.subr.mxu0 0.0
    %90 = vmatpush1.msra.mxu0 %v73
    %91 = vmatprep.subr.mxu0 0.0
    %92 = vmatpush1.msra.mxu0 %v72
    %93 = vmatprep.subr.mxu0 0.0
    %94 = vmatpush1.msra.mxu0 %v71
    %95 = vmatprep.subr.mxu0 0.0
    %96 = vmatpush1.msra.mxu0 %v70
    %97 = vmatprep.subr.mxu0 0.0
    %98 = vmatpush1.msra.mxu0 %v69
    %99 = vmatprep.subr.mxu0 0.0
    %100 = vmatpush1.msra.mxu0 %v68
    %101 = vmatprep.subr.mxu0 0.0
    %102 = vmatpush1.msra.mxu0 %v67
    %103 = vmatprep.subr.mxu0 0.0
    %104 = vmatpush1.msra.mxu0 %v66
    %105 = vmatprep.subr.mxu0 0.0
    %106 = vmatpush1.msra.mxu0 %v65
    %107 = vmatprep.subr.mxu0 0.0
    %108 = vmatpush1.msra.mxu0 %v64
    %109 = vmatprep.subr.mxu0 0.0
    %110 = vmatpush1.msra.mxu0 %v63
    %111 = vmatprep.subr.mxu0 0.0
    %112 = vmatpush2.msra.mxu0 0.0
    %113 = vmatprep.subr.mxu0 0.0
    %114 = vmatpush2.msra.mxu0 0.0
    %115 = vmatprep.subr.mxu0 0.0
    %116 = vmatpush2.msra.mxu0 0.0
    %117 = vmatprep.subr.mxu0 0.0
    %118 = vmatpush2.msra.mxu0 0.0
    %119 = vmatprep.subr.mxu0 0.0
    %120 = vmatpush2.msra.mxu0 0.0
    %121 = vmatprep.subr.mxu0 0.0
    %122 = vmatpush2.msra.mxu0 0.0
    %123 = vmatprep.subr.mxu0 0.0
    %124 = vmatpush2.msra.mxu0 0.0
    %125 = vmatprep.subr.mxu0 0.0
    %126 = vmatpush2.msra.mxu0 0.0
    %127 = vmatprep.subr.mxu0 0.0
    %128 = vmatpush2.msra.mxu0 0.0
    %129 = vmatprep.subr.mxu0 0.0
    %130 = vmatpush2.msra.mxu0 0.0
    %131 = vmatprep.subr.mxu0 0.0
    %132 = vmatpush2.msra.mxu0 0.0
    %133 = vmatprep.subr.mxu0 0.0
    %134 = vmatpush2.msra.mxu0 0.0
    %135 = vmatprep.subr.mxu0 0.0
    %136 = vmatpush2.msra.mxu0 0.0
    %137 = vmatprep.subr.mxu0 0.0
    %138 = vmatpush2.msra.mxu0 0.0
    %139 = vmatprep.subr.mxu0 0.0
    %140 = vmatpush2.msra.mxu0 0.0
    %141 = vmatprep.subr.mxu0 0.0
    %142 = vmatpush2.msra.mxu0 0.0
    %143 = vmatprep.mubr.f32.mxu0 0.0
    %144 = vmatmul.mubr.f32.gmra.mxu0 %v62
    %v145 = vpop.f32.mrf.mxu0
    %v146 = vadd.f32 0.0, %v145
    %v147 = vpop.f32.mrf.mxu0
    %148 = vdwg.mxu0
    %v149 = vmul.f32 %v146, 0.03125
    %v150 = vsub.f32 %v62, %v149
    %v151 = vmul.f32 %v150, %v150
    %152 = vmatprep.subr.mxu0 0.0
    %153 = vmatpush1.msra.mxu0 %v78
    %154 = vmatprep.subr.mxu0 0.0
    %155 = vmatpush1.msra.mxu0 %v77
    %156 = vmatprep.subr.mxu0 0.0
    %157 = vmatpush1.msra.mxu0 %v76
    %158 = vmatprep.subr.mxu0 0.0
    %159 = vmatpush1.msra.mxu0 %v75
    %160 = vmatprep.subr.mxu0 0.0
    %161 = vmatpush1.msra.mxu0 %v74
    %162 = vmatprep.subr.mxu0 0.0
    %163 = vmatpush1.msra.mxu0 %v73
    %164 = vmatprep.subr.mxu0 0.0
    %165 = vmatpush1.msra.mxu0 %v72
    %166 = vmatprep.subr.mxu0 0.0
    %167 = vmatpush1.msra.mxu0 %v71
    %168 = vmatprep.subr.mxu0 0.0
    %169 = vmatpush1.msra.mxu0 %v70
    %170 = vmatprep.subr.mxu0 0.0
    %171 = vmatpush1.msra.mxu0 %v69
    %172 = vmatprep.subr.mxu0 0.0
    %173 = vmatpush1.msra.mxu0 %v68
    %174 = vmatprep.subr.mxu0 0.0
    %175 = vmatpush1.msra.mxu0 %v67
    %176 = vmatprep.subr.mxu0 0.0
    %177 = vmatpush1.msra.mxu0 %v66
    %178 = vmatprep.subr.mxu0 0.0
    %179 = vmatpush1.msra.mxu0 %v65
    %180 = vmatprep.subr.mxu0 0.0
    %181 = vmatpush1.msra.mxu0 %v64
    %182 = vmatprep.subr.mxu0 0.0
    %183 = vmatpush1.msra.mxu0 %v63
    %184 = vmatprep.subr.mxu0 0.0
    %185 = vmatpush2.msra.mxu0 0.0
    %186 = vmatprep.subr.mxu0 0.0
    %187 = vmatpush2.msra.mxu0 0.0
    %188 = vmatprep.subr.mxu0 0.0
    %189 = vmatpush2.msra.mxu0 0.0
    %190 = vmatprep.subr.mxu0 0.0
    %191 = vmatpush2.msra.mxu0 0.0
    %192 = vmatprep.subr.mxu0 0.0
    %193 = vmatpush2.msra.mxu0 0.0
    %194 = vmatprep.subr.mxu0 0.0
    %195 = vmatpush2.msra.mxu0 0.0
    %196 = vmatprep.subr.mxu0 0.0
    %197 = vmatpush2.msra.mxu0 0.0
    %198 = vmatprep.subr.mxu0 0.0
    %199 = vmatpush2.msra.mxu0 0.0
    %200 = vmatprep.subr.mxu0 0.0
    %201 = vmatpush2.msra.mxu0 0.0
    %202 = vmatprep.subr.mxu0 0.0
    %203 = vmatpush2.msra.mxu0 0.0
    %204 = vmatprep.subr.mxu0 0.0
    %205 = vmatpush2.msra.mxu0 0.0
    %206 = vmatprep.subr.mxu0 0.0
    %207 = vmatpush2.msra.mxu0 0.0
    %208 = vmatprep.subr.mxu0 0.0
    %209 = vmatpush2.msra.mxu0 0.0
    %210 = vmatprep.subr.mxu0 0.0
    %211 = vmatpush2.msra.mxu0 0.0
    %212 = vmatprep.subr.mxu0 0.0
    %213 = vmatpush2.msra.mxu0 0.0
    %214 = vmatprep.subr.mxu0 0.0
    %215 = vmatpush2.msra.mxu0 0.0
    %216 = vmatprep.mubr.f32.mxu0 0.0
    %217 = vmatmul.mubr.f32.gmra.mxu0 %v151
    %v218 = vpop.f32.mrf.mxu0
    %v219 = vadd.f32 0.0, %v218
    %v220 = vpop.f32.mrf.mxu0
    %221 = vdwg.mxu0
    %v222 = vmul.f32 %v219, 0.032258064
    %v223 = vrsqrt.pop %v222
    %v224 = vmul.f32 %v222, %v223
    %vm225 = vcmp.eq.f32.partialorder %v222, inf
    %v226 = vsel %vm225, %v222, %v224
    %vm227 = vcmp.eq.f32.partialorder %v222, 0.0
    %v228 = vand.u32 %v222, 2147483648
    %v229 = vsel %vm227, %v228, %v226
    %v230 = vadd.f32 %v229, 1e-06
    %v231 = vrcp.pop %v230
    %v232 = vmul.f32 1.0, %v231
    %s233 = sld [smem:[#allocation2]]
    %v234 = vstv %s233
    %v235 = vmul.f32 %v234, %v232
    %v236 = vmul.f32 %v150, %v235
    %v237 = vpack.c.bf16 %v236, %v236
    %v238 = vld [vmem:[#allocation8] sm:$0xf]
    %v239 = vld [vmem:[#allocation8 + $0x4] sm:$0xf]
    %v240 = vld [vmem:[#allocation8 + $0x8] sm:$0xf]
    %v241 = vld [vmem:[#allocation8 + $0xc] sm:$0xf]
    %v242 = vld [vmem:[#allocation8 + $0x10] sm:$0xf]
    %v243 = vld [vmem:[#allocation8 + $0x14] sm:$0xf]
    %v244 = vld [vmem:[#allocation8 + $0x18] sm:$0xf]
    %v245 = vld [vmem:[#allocation8 + $0x1c] sm:$0xf]
    %v246 = vld [vmem:[#allocation8 + $0x20] sm:$0xf]
    %v247 = vld [vmem:[#allocation8 + $0x24] sm:$0xf]
    %v248 = vld [vmem:[#allocation8 + $0x28] sm:$0xf]
    %v249 = vld [vmem:[#allocation8 + $0x2c] sm:$0xf]
    %v250 = vld [vmem:[#allocation8 + $0x30] sm:$0xf]
    %v251 = vld [vmem:[#allocation8 + $0x34] sm:$0xf]
    %v252 = vld [vmem:[#allocation8 + $0x38] sm:$0xf]
    %v253 = vld [vmem:[#allocation8 + $0x3c] sm:$0xf]
    %v254 = vld [vmem:[%s4] sm:$0x1]
    %v256 = vlaneseq
    %v257 = vshrl.u32 %v256, 7
    %v258 = vsub.s32 0, %v257
    %v259 = vrot.slane %v254, %v258
    %v277 = vunpack.c.l.b16 %v238
    %v278 = vunpack.c.l.b16 %v239
    %v279 = vunpack.c.l.b16 %v240
    %v280 = vunpack.c.l.b16 %v241
    %v281 = vunpack.c.l.b16 %v242
    %v282 = vunpack.c.l.b16 %v243
    %v283 = vunpack.c.l.b16 %v244
    %v284 = vunpack.c.l.b16 %v245
    %v285 = vunpack.c.l.b16 %v246
    %v286 = vunpack.c.l.b16 %v247
    %v287 = vunpack.c.l.b16 %v248
    %v288 = vunpack.c.l.b16 %v249
    %v289 = vunpack.c.l.b16 %v250
    %v290 = vunpack.c.l.b16 %v251
    %v291 = vunpack.c.l.b16 %v252
    %v292 = vunpack.c.l.b16 %v253
    %v293 = vpack.c.b16 %v278, %v277
    %v294 = vpack.c.b16 %v280, %v279
    %v295 = vpack.c.b16 %v282, %v281
    %v296 = vpack.c.b16 %v284, %v283
    %v297 = vpack.c.b16 %v286, %v285
    %v298 = vpack.c.b16 %v288, %v287
    %v299 = vpack.c.b16 %v290, %v289
    %v300 = vpack.c.b16 %v292, %v291
    %309 = vmatprep.subr.bf16.mxu0 0
    %310 = vmatpush1.bf16.msra.mxu0 %v300
    %311 = vmatprep.subr.bf16.mxu0 0
    %312 = vmatpush1.bf16.msra.mxu0 %v299
    %313 = vmatprep.subr.bf16.mxu0 0
    %314 = vmatpush1.bf16.msra.mxu0 %v298
    %315 = vmatprep.subr.bf16.mxu0 0
    %316 = vmatpush1.bf16.msra.mxu0 %v297
    %317 = vmatprep.subr.bf16.mxu0 0
    %318 = vmatpush1.bf16.msra.mxu0 %v296
    %319 = vmatprep.subr.bf16.mxu0 0
    %320 = vmatpush1.bf16.msra.mxu0 %v295
    %321 = vmatprep.subr.bf16.mxu0 0
    %322 = vmatpush1.bf16.msra.mxu0 %v294
    %323 = vmatprep.subr.bf16.mxu0 0
    %324 = vmatpush1.bf16.msra.mxu0 %v293
    %325 = vmatprep.subr.bf16.mxu0 0
    %326 = vmatpush2.bf16.msra.mxu0 0
    %327 = vmatprep.subr.bf16.mxu0 0
    %328 = vmatpush2.bf16.msra.mxu0 0
    %329 = vmatprep.subr.bf16.mxu0 0
    %330 = vmatpush2.bf16.msra.mxu0 0
    %331 = vmatprep.subr.bf16.mxu0 0
    %332 = vmatpush2.bf16.msra.mxu0 0
    %333 = vmatprep.subr.bf16.mxu0 0
    %334 = vmatpush2.bf16.msra.mxu0 0
    %335 = vmatprep.subr.bf16.mxu0 0
    %336 = vmatpush2.bf16.msra.mxu0 0
    %337 = vmatprep.subr.bf16.mxu0 0
    %338 = vmatpush2.bf16.msra.mxu0 0
    %339 = vmatprep.subr.bf16.mxu0 0
    %340 = vmatpush2.bf16.msra.mxu0 0
    %341 = vmatprep.mubr.bf16.mxu0 0
    %342 = vmatmul.mubr.bf16.gmra.mxu0 %v237
    %v343 = vpop.f32.mrf.mxu0
    %v344 = vadd.f32 %v259, %v343
    %v345 = vpop.f32.mrf.mxu0
    %v346 = vpop.f32.mrf.mxu0
    %v347 = vpop.f32.mrf.mxu0
    %348 = vdwg.mxu0
    %v349 = vadd.f32 %v62, %v344
    %350 = vst [vmem:[#allocation9] sm:$0xff] %v349
    // Predicated region
    $region34: #{tpu_custom_call.1} parent=1 // pred_check
      _
    $region35: #{tpu_custom_call.1} parent=1 // pred_check_branch
      %352 = sbr.rel (0) target = $region37
    $region36: #{tpu_custom_call.1} parent=1 // pred_region
      %s354 = ssub.s32 128, 128
      %355 = vsyncadd [#allocation5], %s354
      %s357 = sshll.u32 [#allocation9], 4
      %s358 = int_to_ptr.vmem [resolvable:$true] %s357
      %360 = dma.vmem_to_hbm [thread:$0]  %s358, 128, %s5, [#allocation5]
    $region37: #{tpu_custom_call.1} parent=1 // pred_fallthru
      _
    // Predicated region
    $region38: #{tpu_custom_call.1} parent=1 // pred_check
      _
    $region39: #{tpu_custom_call.1} parent=1 // pred_check_branch
      %362 = sbr.rel (0) target = $region41
    $region40: #{tpu_custom_call.1} parent=1 // pred_region
      %363 = dma.done [#allocation5], 128
    $region41: #{tpu_custom_call.1} parent=1 // pred_fallthru
      _
    %364 = vsyncpa [#allocation4], 1
    %365 = vsyncpa [#allocation7], 1
    %366 = vsyncpa [#allocation5], 1

// kernel: tpu_custom_call.1
$region0: #{tpu_custom_call.1}
  #allocation0 [shape = 'u32[]', space=smem, size = 0x4, offset = 0x4, fixed_abs, tag = 'smem constant byte address 0x4 - core index']
  #allocation1 [shape = 'u32[144,128]{1,0:T(1,128)}', space=vmem, size = 0x12000, scoped, tag = 'internal scratch']
  #allocation2 [shape = 'f32[1]{0:T(128)S(6)}', space=smem, size = 0x200, scoped, tag = 'scoped memory for tpu_custom_call.1']
  %s0 = inlined_call_operand.<no memory space> [shape: f32[1], index: 0, kind: input, shape index: {}]
  %s1 = inlined_call_operand.hbm [shape: f32[128,128], index: 1, kind: input, shape index: {}]
  %s2 = inlined_call_operand.hbm [shape: f32[8,128], index: 2, kind: input, shape index: {}]
  %s3 = inlined_call_operand.hbm [shape: bf16[128,128], index: 3, kind: input, shape index: {}]
  %s4 = inlined_call_operand.vmem [shape: f32[1,128], index: 4, kind: input, shape index: {}]
  %s5 = inlined_call_operand.hbm [shape: f32[8,128], index: 5, kind: output, shape index: {}]
  %s6 = sld [smem:[#allocation0]]
  $region42: #{tpu_custom_call.1} parent=0
    _
  %s8 = ssub.s32 1, %s6
  %s9 = scalar_select 0, %s8, %s6
  %10 = sst [smem:[#allocation2]] %s0
  $region1: #{tpu_custom_call.1} parent=0
    #allocation3 [shape = 'u8[65536]{0}', space=vmem, size = 0x10000, scoped, tag = 'input window, operand 1, single buffered']
    #allocation4 [shape = 's32[1]{0}', space=sflag, size = 0x4, scoped, tag = 'scoped memory for tpu_custom_call.1']
    #allocation5 [shape = 's32[1]{0}', space=sflag, size = 0x4, scoped, tag = 'scoped memory for tpu_custom_call.1']
    #allocation6 [shape = 'u8[4096]{0}', space=vmem, size = 0x1000, scoped, tag = 'input window, operand 2, single buffered']
    #allocation7 [shape = 's32[1]{0}', space=sflag, size = 0x4, scoped, tag = 'scoped memory for tpu_custom_call.1']
    #allocation8 [shape = 'u8[32768]{0}', space=vmem, size = 0x8000, scoped, tag = 'input window, operand 3, single buffered']
    #allocation9 [shape = 'u8[4096]{0}', space=vmem, size = 0x1000, scoped, tag = 'output window, operand 0, single buffered']
    %11 = vsyncpa [#allocation4], 0
    %12 = vsyncpa [#allocation7], 0
    %13 = vsyncpa [#allocation5], 0
    // Predicated region
    $region2: #{tpu_custom_call.1} parent=1 // pred_check
      _
    $region3: #{tpu_custom_call.1} parent=1 // pred_check_branch
      %15 = sbr.rel (0) target = $region5
    $region4: #{tpu_custom_call.1} parent=1 // pred_region
      _
    $region5: #{tpu_custom_call.1} parent=1 // pred_fallthru
      _
    // Predicated region
    $region6: #{tpu_custom_call.1} parent=1 // pred_check
      _
    $region7: #{tpu_custom_call.1} parent=1 // pred_check_branch
      %17 = sbr.rel (0) target = $region9
    $region8: #{tpu_custom_call.1} parent=1 // pred_region
      %s19 = ssub.s32 2048, 2048
      %20 = vsyncadd [#allocation4], %s19
      %s21 = sshll.u32 [#allocation3], 4
      %s22 = int_to_ptr.vmem [resolvable:$true] %s21
      %27 = dma.hbm_to_vmem [thread:$0]  %s1, 2048, %s22, [#allocation4], 128, 128, 8
    $region9: #{tpu_custom_call.1} parent=1 // pred_fallthru
      _
    // Predicated region
    $region10: #{tpu_custom_call.1} parent=1 // pred_check
      _
    $region11: #{tpu_custom_call.1} parent=1 // pred_check_branch
      %29 = sbr.rel (0) target = $region13
    $region12: #{tpu_custom_call.1} parent=1 // pred_region
      %s31 = ssub.s32 128, 128
      %32 = vsyncadd [#allocation7], %s31
      %s34 = sshll.u32 [#allocation6], 4
      %s35 = int_to_ptr.vmem [resolvable:$true] %s34
      %37 = dma.hbm_to_vmem [thread:$0]  %s2, 128, %s35, [#allocation7]
    $region13: #{tpu_custom_call.1} parent=1 // pred_fallthru
      _
    // Predicated region
    $region14: #{tpu_custom_call.1} parent=1 // pred_check
      _
    $region15: #{tpu_custom_call.1} parent=1 // pred_check_branch
      %39 = sbr.rel (0) target = $region17
    $region16: #{tpu_custom_call.1} parent=1 // pred_region
      %s41 = ssub.s32 1024, 1024
      %42 = vsyncadd [#allocation7], %s41
      %s43 = sshll.u32 [#allocation8], 4
      %s44 = int_to_ptr.vmem [resolvable:$true] %s43
      %49 = dma.hbm_to_vmem [thread:$0]  %s3, 1024, %s44, [#allocation7], 64, 64, 4
    $region17: #{tpu_custom_call.1} parent=1 // pred_fallthru
      _
    // Predicated region
    $region18: #{tpu_custom_call.1} parent=1 // pred_check
      _
    $region19: #{tpu_custom_call.1} parent=1 // pred_check_branch
      %51 = sbr.rel (0) target = $region21
    $region20: #{tpu_custom_call.1} parent=1 // pred_region
      _
    $region21: #{tpu_custom_call.1} parent=1 // pred_fallthru
      _
    // Predicated region
    $region22: #{tpu_custom_call.1} parent=1 // pred_check
      _
    $region23: #{tpu_custom_call.1} parent=1 // pred_check_branch
      %53 = sbr.rel (0) target = $region25
    $region24: #{tpu_custom_call.1} parent=1 // pred_region
      %54 = dma.done [#allocation4], 2048
    $region25: #{tpu_custom_call.1} parent=1 // pred_fallthru
      _
    // Predicated region
    $region26: #{tpu_custom_call.1} parent=1 // pred_check
      _
    $region27: #{tpu_custom_call.1} parent=1 // pred_check_branch
      %56 = sbr.rel (0) target = $region29
    $region28: #{tpu_custom_call.1} parent=1 // pred_region
      %57 = dma.done [#allocation7], 128
    $region29: #{tpu_custom_call.1} parent=1 // pred_fallthru
      _
    // Predicated region
    $region30: #{tpu_custom_call.1} parent=1 // pred_check
      _
    $region31: #{tpu_custom_call.1} parent=1 // pred_check_branch
      %59 = sbr.rel (0) target = $region33
    $region32: #{tpu_custom_call.1} parent=1 // pred_region
      %60 = dma.done [#allocation7], 1024
    $region33: #{tpu_custom_call.1} parent=1 // pred_fallthru
      _
    %v62 = vld [vmem:[#allocation6] sm:$0xff]
    %v63 = vld [vmem:[#allocation3] sm:$0xff]
    %v64 = vld [vmem:[#allocation3 + $0x8] sm:$0xff]
    %v65 = vld [vmem:[#allocation3 + $0x10] sm:$0xff]
    %v66 = vld [vmem:[#allocation3 + $0x18] sm:$0xff]
    %v67 = vld [vmem:[#allocation3 + $0x20] sm:$0xff]
    %v68 = vld [vmem:[#allocation3 + $0x28] sm:$0xff]
    %v69 = vld [vmem:[#allocation3 + $0x30] sm:$0xff]
    %v70 = vld [vmem:[#allocation3 + $0x38] sm:$0xff]
    %v71 = vld [vmem:[#allocation3 + $0x40] sm:$0xff]
    %v72 = vld [vmem:[#allocation3 + $0x48] sm:$0xff]
    %v73 = vld [vmem:[#allocation3 + $0x50] sm:$0xff]
    %v74 = vld [vmem:[#allocation3 + $0x58] sm:$0xff]
    %v75 = vld [vmem:[#allocation3 + $0x60] sm:$0xff]
    %v76 = vld [vmem:[#allocation3 + $0x68] sm:$0xff]
    %v77 = vld [vmem:[#allocation3 + $0x70] sm:$0xff]
    %v78 = vld [vmem:[#allocation3 + $0x78] sm:$0xff]
    %79 = vmatprep.subr.mxu0 0.0
    %80 = vmatpush1.msra.mxu0 %v78
    %81 = vmatprep.subr.mxu0 0.0
    %82 = vmatpush1.msra.mxu0 %v77
    %83 = vmatprep.subr.mxu0 0.0
    %84 = vmatpush1.msra.mxu0 %v76
    %85 = vmatprep.subr.mxu0 0.0
    %86 = vmatpush1.msra.mxu0 %v75
    %87 = vmatprep.subr.mxu0 0.0
    %88 = vmatpush1.msra.mxu0 %v74
    %89 = vmatprep.subr.mxu0 0.0
    %90 = vmatpush1.msra.mxu0 %v73
    %91 = vmatprep.subr.mxu0 0.0
    %92 = vmatpush1.msra.mxu0 %v72
    %93 = vmatprep.subr.mxu0 0.0
    %94 = vmatpush1.msra.mxu0 %v71
    %95 = vmatprep.subr.mxu0 0.0
    %96 = vmatpush1.msra.mxu0 %v70
    %97 = vmatprep.subr.mxu0 0.0
    %98 = vmatpush1.msra.mxu0 %v69
    %99 = vmatprep.subr.mxu0 0.0
    %100 = vmatpush1.msra.mxu0 %v68
    %101 = vmatprep.subr.mxu0 0.0
    %102 = vmatpush1.msra.mxu0 %v67
    %103 = vmatprep.subr.mxu0 0.0
    %104 = vmatpush1.msra.mxu0 %v66
    %105 = vmatprep.subr.mxu0 0.0
    %106 = vmatpush1.msra.mxu0 %v65
    %107 = vmatprep.subr.mxu0 0.0
    %108 = vmatpush1.msra.mxu0 %v64
    %109 = vmatprep.subr.mxu0 0.0
    %110 = vmatpush1.msra.mxu0 %v63
    %111 = vmatprep.subr.mxu0 0.0
    %112 = vmatpush2.msra.mxu0 0.0
    %113 = vmatprep.subr.mxu0 0.0
    %114 = vmatpush2.msra.mxu0 0.0
    %115 = vmatprep.subr.mxu0 0.0
    %116 = vmatpush2.msra.mxu0 0.0
    %117 = vmatprep.subr.mxu0 0.0
    %118 = vmatpush2.msra.mxu0 0.0
    %119 = vmatprep.subr.mxu0 0.0
    %120 = vmatpush2.msra.mxu0 0.0
    %121 = vmatprep.subr.mxu0 0.0
    %122 = vmatpush2.msra.mxu0 0.0
    %123 = vmatprep.subr.mxu0 0.0
    %124 = vmatpush2.msra.mxu0 0.0
    %125 = vmatprep.subr.mxu0 0.0
    %126 = vmatpush2.msra.mxu0 0.0
    %127 = vmatprep.subr.mxu0 0.0
    %128 = vmatpush2.msra.mxu0 0.0
    %129 = vmatprep.subr.mxu0 0.0
    %130 = vmatpush2.msra.mxu0 0.0
    %131 = vmatprep.subr.mxu0 0.0
    %132 = vmatpush2.msra.mxu0 0.0
    %133 = vmatprep.subr.mxu0 0.0
    %134 = vmatpush2.msra.mxu0 0.0
    %135 = vmatprep.subr.mxu0 0.0
    %136 = vmatpush2.msra.mxu0 0.0
    %137 = vmatprep.subr.mxu0 0.0
    %138 = vmatpush2.msra.mxu0 0.0
    %139 = vmatprep.subr.mxu0 0.0
    %140 = vmatpush2.msra.mxu0 0.0
    %141 = vmatprep.subr.mxu0 0.0
    %142 = vmatpush2.msra.mxu0 0.0
    %143 = vmatprep.mubr.f32.mxu0 0.0
    %144 = vmatmul.mubr.f32.gmra.mxu0 %v62
    %v145 = vpop.f32.mrf.mxu0
    %v146 = vadd.f32 0.0, %v145
    %v147 = vpop.f32.mrf.mxu0
    %148 = vdwg.mxu0
    %v149 = vmul.f32 %v146, 0.03125
    %v150 = vsub.f32 %v62, %v149
    %v151 = vmul.f32 %v150, %v150
    %152 = vmatprep.subr.mxu0 0.0
    %153 = vmatpush1.msra.mxu0 %v78
    %154 = vmatprep.subr.mxu0 0.0
    %155 = vmatpush1.msra.mxu0 %v77
    %156 = vmatprep.subr.mxu0 0.0
    %157 = vmatpush1.msra.mxu0 %v76
    %158 = vmatprep.subr.mxu0 0.0
    %159 = vmatpush1.msra.mxu0 %v75
    %160 = vmatprep.subr.mxu0 0.0
    %161 = vmatpush1.msra.mxu0 %v74
    %162 = vmatprep.subr.mxu0 0.0
    %163 = vmatpush1.msra.mxu0 %v73
    %164 = vmatprep.subr.mxu0 0.0
    %165 = vmatpush1.msra.mxu0 %v72
    %166 = vmatprep.subr.mxu0 0.0
    %167 = vmatpush1.msra.mxu0 %v71
    %168 = vmatprep.subr.mxu0 0.0
    %169 = vmatpush1.msra.mxu0 %v70
    %170 = vmatprep.subr.mxu0 0.0
    %171 = vmatpush1.msra.mxu0 %v69
    %172 = vmatprep.subr.mxu0 0.0
    %173 = vmatpush1.msra.mxu0 %v68
    %174 = vmatprep.subr.mxu0 0.0
    %175 = vmatpush1.msra.mxu0 %v67
    %176 = vmatprep.subr.mxu0 0.0
    %177 = vmatpush1.msra.mxu0 %v66
    %178 = vmatprep.subr.mxu0 0.0
    %179 = vmatpush1.msra.mxu0 %v65
    %180 = vmatprep.subr.mxu0 0.0
    %181 = vmatpush1.msra.mxu0 %v64
    %182 = vmatprep.subr.mxu0 0.0
    %183 = vmatpush1.msra.mxu0 %v63
    %184 = vmatprep.subr.mxu0 0.0
    %185 = vmatpush2.msra.mxu0 0.0
    %186 = vmatprep.subr.mxu0 0.0
    %187 = vmatpush2.msra.mxu0 0.0
    %188 = vmatprep.subr.mxu0 0.0
    %189 = vmatpush2.msra.mxu0 0.0
    %190 = vmatprep.subr.mxu0 0.0
    %191 = vmatpush2.msra.mxu0 0.0
    %192 = vmatprep.subr.mxu0 0.0
    %193 = vmatpush2.msra.mxu0 0.0
    %194 = vmatprep.subr.mxu0 0.0
    %195 = vmatpush2.msra.mxu0 0.0
    %196 = vmatprep.subr.mxu0 0.0
    %197 = vmatpush2.msra.mxu0 0.0
    %198 = vmatprep.subr.mxu0 0.0
    %199 = vmatpush2.msra.mxu0 0.0
    %200 = vmatprep.subr.mxu0 0.0
    %201 = vmatpush2.msra.mxu0 0.0
    %202 = vmatprep.subr.mxu0 0.0
    %203 = vmatpush2.msra.mxu0 0.0
    %204 = vmatprep.subr.mxu0 0.0
    %205 = vmatpush2.msra.mxu0 0.0
    %206 = vmatprep.subr.mxu0 0.0
    %207 = vmatpush2.msra.mxu0 0.0
    %208 = vmatprep.subr.mxu0 0.0
    %209 = vmatpush2.msra.mxu0 0.0
    %210 = vmatprep.subr.mxu0 0.0
    %211 = vmatpush2.msra.mxu0 0.0
    %212 = vmatprep.subr.mxu0 0.0
    %213 = vmatpush2.msra.mxu0 0.0
    %214 = vmatprep.subr.mxu0 0.0
    %215 = vmatpush2.msra.mxu0 0.0
    %216 = vmatprep.mubr.f32.mxu0 0.0
    %217 = vmatmul.mubr.f32.gmra.mxu0 %v151
    %v218 = vpop.f32.mrf.mxu0
    %v219 = vadd.f32 0.0, %v218
    %v220 = vpop.f32.mrf.mxu0
    %221 = vdwg.mxu0
    %v222 = vmul.f32 %v219, 0.032258064
    %v223 = vrsqrt.pop %v222
    %v224 = vmul.f32 %v222, %v223
    %vm225 = vcmp.eq.f32.partialorder %v222, inf
    %v226 = vsel %vm225, %v222, %v224
    %vm227 = vcmp.eq.f32.partialorder %v222, 0.0
    %v228 = vand.u32 %v222, 2147483648
    %v229 = vsel %vm227, %v228, %v226
    %v230 = vadd.f32 %v229, 1e-06
    %v231 = vrcp.pop %v230
    %v232 = vmul.f32 1.0, %v231
    %s233 = sld [smem:[#allocation2]]
    %v234 = vstv %s233
    %v235 = vmul.f32 %v234, %v232
    %v236 = vmul.f32 %v150, %v235
    %v237 = vpack.c.bf16 %v236, %v236
    %v238 = vld [vmem:[#allocation8] sm:$0xf]
    %v239 = vld [vmem:[#allocation8 + $0x4] sm:$0xf]
    %v240 = vld [vmem:[#allocation8 + $0x8] sm:$0xf]
    %v241 = vld [vmem:[#allocation8 + $0xc] sm:$0xf]
    %v242 = vld [vmem:[#allocation8 + $0x10] sm:$0xf]
    %v243 = vld [vmem:[#allocation8 + $0x14] sm:$0xf]
    %v244 = vld [vmem:[#allocation8 + $0x18] sm:$0xf]
    %v245 = vld [vmem:[#allocation8 + $0x1c] sm:$0xf]
    %v246 = vld [vmem:[#allocation8 + $0x20] sm:$0xf]
    %v247 = vld [vmem:[#allocation8 + $0x24] sm:$0xf]
    %v248 = vld [vmem:[#allocation8 + $0x28] sm:$0xf]
    %v249 = vld [vmem:[#allocation8 + $0x2c] sm:$0xf]
    %v250 = vld [vmem:[#allocation8 + $0x30] sm:$0xf]
    %v251 = vld [vmem:[#allocation8 + $0x34] sm:$0xf]
    %v252 = vld [vmem:[#allocation8 + $0x38] sm:$0xf]
    %v253 = vld [vmem:[#allocation8 + $0x3c] sm:$0xf]
    %v254 = vld [vmem:[%s4] sm:$0x1]
    %v256 = vlaneseq
    %v257 = vshrl.u32 %v256, 7
    %v258 = vsub.s32 0, %v257
    %v259 = vrot.slane %v254, %v258
    %v277 = vunpack.c.l.b16 %v238
    %v278 = vunpack.c.l.b16 %v239
    %v279 = vunpack.c.l.b16 %v240
    %v280 = vunpack.c.l.b16 %v241
    %v281 = vunpack.c.l.b16 %v242
    %v282 = vunpack.c.l.b16 %v243
    %v283 = vunpack.c.l.b16 %v244
    %v284 = vunpack.c.l.b16 %v245
    %v285 = vunpack.c.l.b16 %v246
    %v286 = vunpack.c.l.b16 %v247
    %v287 = vunpack.c.l.b16 %v248
    %v288 = vunpack.c.l.b16 %v249
    %v289 = vunpack.c.l.b16 %v250
    %v290 = vunpack.c.l.b16 %v251
    %v291 = vunpack.c.l.b16 %v252
    %v292 = vunpack.c.l.b16 %v253
    %v293 = vpack.c.b16 %v278, %v277
    %v294 = vpack.c.b16 %v280, %v279
    %v295 = vpack.c.b16 %v282, %v281
    %v296 = vpack.c.b16 %v284, %v283
    %v297 = vpack.c.b16 %v286, %v285
    %v298 = vpack.c.b16 %v288, %v287
    %v299 = vpack.c.b16 %v290, %v289
    %v300 = vpack.c.b16 %v292, %v291
    %309 = vmatprep.subr.bf16.mxu0 0
    %310 = vmatpush1.bf16.msra.mxu0 %v300
    %311 = vmatprep.subr.bf16.mxu0 0
    %312 = vmatpush1.bf16.msra.mxu0 %v299
    %313 = vmatprep.subr.bf16.mxu0 0
    %314 = vmatpush1.bf16.msra.mxu0 %v298
    %315 = vmatprep.subr.bf16.mxu0 0
    %316 = vmatpush1.bf16.msra.mxu0 %v297
    %317 = vmatprep.subr.bf16.mxu0 0
    %318 = vmatpush1.bf16.msra.mxu0 %v296
    %319 = vmatprep.subr.bf16.mxu0 0
    %320 = vmatpush1.bf16.msra.mxu0 %v295
    %321 = vmatprep.subr.bf16.mxu0 0
    %322 = vmatpush1.bf16.msra.mxu0 %v294
    %323 = vmatprep.subr.bf16.mxu0 0
    %324 = vmatpush1.bf16.msra.mxu0 %v293
    %325 = vmatprep.subr.bf16.mxu0 0
    %326 = vmatpush2.bf16.msra.mxu0 0
    %327 = vmatprep.subr.bf16.mxu0 0
    %328 = vmatpush2.bf16.msra.mxu0 0
    %329 = vmatprep.subr.bf16.mxu0 0
    %330 = vmatpush2.bf16.msra.mxu0 0
    %331 = vmatprep.subr.bf16.mxu0 0
    %332 = vmatpush2.bf16.msra.mxu0 0
    %333 = vmatprep.subr.bf16.mxu0 0
    %334 = vmatpush2.bf16.msra.mxu0 0
    %335 = vmatprep.subr.bf16.mxu0 0
    %336 = vmatpush2.bf16.msra.mxu0 0
    %337 = vmatprep.subr.bf16.mxu0 0
    %338 = vmatpush2.bf16.msra.mxu0 0
    %339 = vmatprep.subr.bf16.mxu0 0
    %340 = vmatpush2.bf16.msra.mxu0 0
    %341 = vmatprep.mubr.bf16.mxu0 0
    %342 = vmatmul.mubr.bf16.gmra.mxu0 %v237
    %v343 = vpop.f32.mrf.mxu0
    %v344 = vadd.f32 %v259, %v343
    %v345 = vpop.f32.mrf.mxu0
    %v346 = vpop.f32.mrf.mxu0
    %v347 = vpop.f32.mrf.mxu0
    %348 = vdwg.mxu0
    %v349 = vadd.f32 %v62, %v344
    %350 = vst [vmem:[#allocation9] sm:$0xff] %v349
    // Predicated region
    $region34: #{tpu_custom_call.1} parent=1 // pred_check
      _
    $region35: #{tpu_custom_call.1} parent=1 // pred_check_branch
      %352 = sbr.rel (0) target = $region37
    $region36: #{tpu_custom_call.1} parent=1 // pred_region
      %s354 = ssub.s32 128, 128
      %355 = vsyncadd [#allocation5], %s354
      %s357 = sshll.u32 [#allocation9], 4
      %s358 = int_to_ptr.vmem [resolvable:$true] %s357
      %360 = dma.vmem_to_hbm [thread:$0]  %s358, 128, %s5, [#allocation5]
    $region37: #{tpu_custom_call.1} parent=1 // pred_fallthru
      _
    // Predicated region
    $region38: #{tpu_custom_call.1} parent=1 // pred_check
      _
    $region39: #{tpu_custom_call.1} parent=1 // pred_check_branch
      %362 = sbr.rel (0) target = $region41
    $region40: #{tpu_custom_call.1} parent=1 // pred_region
      %363 = dma.done [#allocation5], 128
    $region41: #{tpu_custom_call.1} parent=1 // pred_fallthru
      _
    %364 = vsyncpa [#allocation4], 1
    %365 = vsyncpa [#allocation7], 1
    %366 = vsyncpa [#allocation5], 1

</llo_original>
